<compile_context>
chip_gen: v5e
topology: v5e:2x2
jax: 0.10.0
libtpu: 0.0.40
codegen_flags: <defaults>
</compile_context>

<pallas_src>
import functools

import numpy as np
import jax
import jax.numpy as jnp
from jax.experimental import pallas as pl
from jax.experimental.pallas import tpu as pltpu


def _adaptive_pool_weights(in_size: int, out_size: int) -> np.ndarray:
    """(out_size, in_size) averaging matrix matching nn.AdaptiveAvgPool2d.

    Window for output index i is [floor(i*In/Out), ceil((i+1)*In/Out)).
    """
    idx = np.arange(out_size)
    starts = (idx * in_size) // out_size
    ends = -((-(idx + 1) * in_size) // out_size)  # ceil division
    j = np.arange(in_size)
    mask = (j[None, :] >= starts[:, None]) & (j[None, :] < ends[:, None])
    return mask.astype(np.float32) / (ends - starts)[:, None].astype(np.float32)


def _round_up(x: int, n: int) -> int:
    return -(-x // n) * n


def _pool_kernel(x_ref, k_ref, o_ref):
    # x_ref: (tm, H*W*2)      f32, re/im interleaved along the minor axis
    # k_ref: (H*W*2, OH*OW*2) f32, Kronecker pooling matrix (A_h^T (x) A_w^T (x) I2)
    # o_ref: (tm, OH*OW*2)    f32
    o_ref[...] = jnp.dot(x_ref[...], k_ref[...],
                         preferred_element_type=jnp.float32)


def complex_adaptive_avg_pool2d(x_complex, output_size):
    """x_complex: (B, C, H, W) complex64 -> (B, C, OH, OW) complex64."""
    if isinstance(output_size, int):
        output_size = (output_size, output_size)
    oh, ow = output_size
    b, c, h, w = x_complex.shape
    m = b * c
    kin = h * w * 2
    kout = oh * ow * 2

    # Interleaved re/im f32 view of the input, flattened to lane-dense rows.
    # (Row index = h*(W*2) + w*2 + {re,im}, matching the Kronecker matrix rows.)
    x_ri = jnp.stack((jnp.real(x_complex), jnp.imag(x_complex)), axis=-1)
    x_flat = x_ri.astype(jnp.float32).reshape(m, kin)

    # Precomputed pooling matrix reproducing PyTorch's floor/ceil windows exactly.
    a_h = _adaptive_pool_weights(h, oh)          # (OH, H)
    a_w = _adaptive_pool_weights(w, ow)          # (OW, W)
    k_mat = jnp.asarray(
        np.kron(np.kron(a_h.T, a_w.T), np.eye(2, dtype=np.float32)),
        dtype=jnp.float32)                        # (kin, kout)

    # --- block sizing: account for (8,128) lane/sublane padding + 2x buffering ---
    kin_pad = _round_up(kin, 128)
    kout_pad = _round_up(kout, 128)
    bytes_per_row = (kin_pad + kout_pad) * 4
    target_block_bytes = 12 * 1024 * 1024         # ~12 MiB (in + out) per step
    tm = max(8, (target_block_bytes // bytes_per_row) // 8 * 8)
    if m >= 16:
        # keep >= 2 grid steps so "parallel" can shard across both v7x TCs
        tm = min(tm, max(8, (m // 2) // 8 * 8))
    tm = min(tm, m)                               # multiple of 8, or the full dim
    grid = (pl.cdiv(m, tm),)

    # Explicit VMEM budget: 2x input block + 2x output block + 2x weight block,
    # with margin, capped below v7x's 64 MiB physical VMEM.
    pipelined_bytes = (2 * tm * kin_pad + 2 * tm * kout_pad
                       + 2 * _round_up(kin, 8) * kout_pad) * 4
    vmem_limit_bytes = min(48 * 1024 * 1024,
                           max(16 * 1024 * 1024,
                               int(pipelined_bytes * 1.25) + (2 << 20)))

    flops = 2 * m * kin * kout
    bytes_accessed = 4 * (m * kin + m * kout + kin * kout)

    out = pl.pallas_call(
        _pool_kernel,
        out_shape=jax.ShapeDtypeStruct((m, kout), jnp.float32),
        grid=grid,
        in_specs=[
            pl.BlockSpec((tm, kin), lambda i: (i, 0)),
            pl.BlockSpec((kin, kout), lambda i: (0, 0)),
        ],
        out_specs=pl.BlockSpec((tm, kout), lambda i: (i, 0)),
        compiler_params=pltpu.CompilerParams(
            dimension_semantics=("parallel",),
            vmem_limit_bytes=vmem_limit_bytes),
        cost_estimate=pl.CostEstimate(
            flops=flops, transcendentals=0, bytes_accessed=bytes_accessed),
    )(x_flat, k_mat)

    out = out.reshape(b, c, oh, ow, 2)
    return jax.lax.complex(out[..., 0], out[..., 1])


class ComplexAdaptiveAvgPool2d:
    """Mirror of the PyTorch module's forward."""

    def __init__(self, output_size):
        self.output_size = output_size

    def __call__(self, inputs):
        return complex_adaptive_avg_pool2d(inputs, self.output_size)


def _ref_pool_general(v, oh, ow):
    """Pure-JAX adaptive avg pool reference via explicit windows (works on complex)."""
    h, w = v.shape[-2], v.shape[-1]
    rows = []
    for i in range(oh):
        hs, he = (i * h) // oh, -((-(i + 1) * h) // oh)
        cols = []
        for j in range(ow):
            ws, we = (j * w) // ow, -((-(j + 1) * w) // ow)
            cols.append(v[..., hs:he, ws:we].mean(axis=(-2, -1)))
        rows.append(jnp.stack(cols, axis=-1))
    return jnp.stack(rows, axis=-2)


if __name__ == "__main__":
    key = jax.random.PRNGKey(0)
    kr, ki = jax.random.split(key)

    B, C, H, W = 2, 4, 16, 16
    x = jax.lax.complex(
        jax.random.normal(kr, (B, C, H, W), jnp.float32),
        jax.random.normal(ki, (B, C, H, W), jnp.float32),
    )

    # Divisible case (output 8x8): reference is a simple reshape-mean.
    pool8 = jax.jit(functools.partial(complex_adaptive_avg_pool2d, output_size=(8, 8)))
    out8 = jax.block_until_ready(pool8(x))
    ref8_r = jnp.real(x).reshape(B, C, 8, H // 8, 8, W // 8).mean(axis=(3, 5))
    ref8_i = jnp.imag(x).reshape(B, C, 8, H // 8, 8, W // 8).mean(axis=(3, 5))
    ref8 = jax.lax.complex(ref8_r, ref8_i)
    assert out8.shape == (B, C, 8, 8)
    assert jnp.allclose(out8, ref8, atol=1e-5, rtol=1e-5)

    # Non-divisible case (output 7x5): exercises the adaptive floor/ceil windows.
    pool75 = jax.jit(functools.partial(complex_adaptive_avg_pool2d, output_size=(7, 5)))
    out75 = jax.block_until_ready(pool75(x))
    ref75 = _ref_pool_general(x, 7, 5)
    assert out75.shape == (B, C, 7, 5)
    assert jnp.allclose(out75, ref75, atol=1e-5, rtol=1e-5)

    print("KERNEL_OK")
</pallas_src>

<mosaic_0001>
module attributes {stable_mosaic.version = 11 : i64} {
  func.func @_pool_kernel(%arg0: i32, %arg1: memref<8x512xf32, #tpu.memory_space<vmem>>, %arg2: memref<512x128xf32, #tpu.memory_space<vmem>>, %arg3: memref<8x128xf32, #tpu.memory_space<vmem>>) attributes {dimension_semantics = [#tpu.dimension_semantics<parallel>], iteration_bounds = array<i64: 1>, scalar_prefetch = 0 : i64, scratch_operands = 0 : i64, tpu.core_type = #tpu.core_type<tc>, window_params = [{transform_indices = @transform_0, window_bounds = array<i64: 8, 512>}, {pipeline_mode = #tpu.pipeline_mode<synchronous>, transform_indices = @transform_1, window_bounds = array<i64: 512, 128>}, {transform_indices = @transform_2, window_bounds = array<i64: 8, 128>}]} {
    %c0 = arith.constant 0 : index
    %c0_0 = arith.constant 0 : index
    %0 = vector.load %arg1[%c0, %c0_0] : memref<8x512xf32, #tpu.memory_space<vmem>>, vector<8x512xf32>
    %c0_1 = arith.constant 0 : index
    %c0_2 = arith.constant 0 : index
    %1 = vector.load %arg2[%c0_1, %c0_2] : memref<512x128xf32, #tpu.memory_space<vmem>>, vector<512x128xf32>
    %cst = arith.constant dense<0.000000e+00> : vector<8x128xf32>
    %2 = tpu.matmul %0, %1, %cst {dimension_numbers = #tpu.dot_dimension_numbers<[1], [0], [0], [1], [0, 0, 1, 1], [], []>} : vector<8x512xf32>, vector<512x128xf32>, vector<8x128xf32> -> vector<8x128xf32>
    %c0_3 = arith.constant 0 : index
    %c0_4 = arith.constant 0 : index
    %3 = vector.load %arg3[%c0_3, %c0_4] : memref<8x128xf32, #tpu.memory_space<vmem>>, vector<8x128xf32>
    tpu.vector_store %arg3[%c0_3, %c0_4], %2 {strides = array<i32>} : memref<8x128xf32, #tpu.memory_space<vmem>>, vector<8x128xf32>,
    return
  }
  func.func @transform_0(%arg0: i32) -> (i32, i32) {
    %c0_i32 = arith.constant 0 : i32
    %c0_i32_0 = arith.constant 0 : i32
    return %arg0, %c0_i32 : i32, i32
  }
  func.func @transform_1(%arg0: i32) -> (i32, i32) {
    %c0_i32 = arith.constant 0 : i32
    %c0_i32_0 = arith.constant 0 : i32
    %c0_i32_1 = arith.constant 0 : i32
    return %c0_i32, %c0_i32_0 : i32, i32
  }
  func.func @transform_2(%arg0: i32) -> (i32, i32) {
    %c0_i32 = arith.constant 0 : i32
    %c0_i32_0 = arith.constant 0 : i32
    return %arg0, %c0_i32 : i32, i32
  }
}

</mosaic_0001>

<llo_original>
// kernel: custom-call.1
$region0: #{custom-call.1}
  %s0 = inlined_call_operand.hbm [shape: c64[2,4,16,16], index: 0, kind: input, shape index: {}]
  %s1 = inlined_call_operand.vmem [shape: f32[2,4,16,16], index: 1, kind: output, shape index: {}]
  %s2 = scalar_lea.hbm %s0, 128
  $region1: #{custom-call.1} parent=0
    #allocation0 [shape = 's32[1]{0}', space=sflag, size = 0x4, scoped, tag = 'scoped memory for custom-call.1']
    %3 = vsyncpa [#allocation0], 0
    %s5 = sshll.u32 %s2, 4
    %s6 = int_to_ptr.hbm [resolvable:$true] %s5
    %s7 = sshll.u32 %s1, 4
    %s8 = int_to_ptr.vmem [resolvable:$true] %s7
    %10 = dma.hbm_to_vmem [thread:$0]  %s6, 2048, %s8, [#allocation0]
    %12 = dma.done [#allocation0], 2048
    %13 = vsyncpa [#allocation0], 1

// kernel: custom-call
$region0: #{custom-call}
  %s0 = inlined_call_operand.hbm [shape: c64[2,4,16,16], index: 0, kind: input, shape index: {}]
  %s1 = inlined_call_operand.vmem [shape: f32[2,4,16,16], index: 1, kind: output, shape index: {}]
  $region1: #{custom-call} parent=0
    #allocation0 [shape = 's32[1]{0}', space=sflag, size = 0x4, scoped, tag = 'scoped memory for custom-call']
    %2 = vsyncpa [#allocation0], 0
    %s4 = sshll.u32 %s0, 4
    %s5 = int_to_ptr.hbm [resolvable:$true] %s4
    %s6 = sshll.u32 %s1, 4
    %s7 = int_to_ptr.vmem [resolvable:$true] %s6
    %9 = dma.hbm_to_vmem [thread:$0]  %s5, 2048, %s7, [#allocation0]
    %11 = dma.done [#allocation0], 2048
    %12 = vsyncpa [#allocation0], 1

// kernel: custom-call.2
$region0: #{custom-call.2}
  %s0 = inlined_call_operand.vmem [shape: f32[2,4,8,8], index: 0, kind: input, shape index: {}]
  %s1 = inlined_call_operand.vmem [shape: f32[2,4,8,8], index: 1, kind: input, shape index: {}]
  %s2 = inlined_call_operand.vmem [shape: c64[2,4,8,8], index: 2, kind: output, shape index: {}]
  %s3 = scalar_lea.vmem %s2, 128
  %v4 = vld [vmem:[%s0] sm:$0xff]
  %5 = vst [vmem:[%s2] sm:$0xff] %v4
  %s6 = scalar_lea.vmem %s2, 8
  %s7 = scalar_lea.vmem %s0, 8
  %v8 = vld [vmem:[%s7] sm:$0xff]
  %9 = vst [vmem:[%s6] sm:$0xff] %v8
  %s10 = scalar_lea.vmem %s2, 16
  %s11 = scalar_lea.vmem %s0, 16
  %v12 = vld [vmem:[%s11] sm:$0xff]
  %13 = vst [vmem:[%s10] sm:$0xff] %v12
  %s14 = scalar_lea.vmem %s2, 24
  %s15 = scalar_lea.vmem %s0, 24
  %v16 = vld [vmem:[%s15] sm:$0xff]
  %17 = vst [vmem:[%s14] sm:$0xff] %v16
  %s18 = scalar_lea.vmem %s2, 32
  %s19 = scalar_lea.vmem %s0, 32
  %v20 = vld [vmem:[%s19] sm:$0xff]
  %21 = vst [vmem:[%s18] sm:$0xff] %v20
  %s22 = scalar_lea.vmem %s2, 40
  %s23 = scalar_lea.vmem %s0, 40
  %v24 = vld [vmem:[%s23] sm:$0xff]
  %25 = vst [vmem:[%s22] sm:$0xff] %v24
  %s26 = scalar_lea.vmem %s2, 48
  %s27 = scalar_lea.vmem %s0, 48
  %v28 = vld [vmem:[%s27] sm:$0xff]
  %29 = vst [vmem:[%s26] sm:$0xff] %v28
  %s30 = scalar_lea.vmem %s2, 56
  %s31 = scalar_lea.vmem %s0, 56
  %v32 = vld [vmem:[%s31] sm:$0xff]
  %33 = vst [vmem:[%s30] sm:$0xff] %v32
  %s34 = scalar_lea.vmem %s2, 64
  %s35 = scalar_lea.vmem %s0, 64
  %v36 = vld [vmem:[%s35] sm:$0xff]
  %37 = vst [vmem:[%s34] sm:$0xff] %v36
  %s38 = scalar_lea.vmem %s2, 72
  %s39 = scalar_lea.vmem %s0, 72
  %v40 = vld [vmem:[%s39] sm:$0xff]
  %41 = vst [vmem:[%s38] sm:$0xff] %v40
  %s42 = scalar_lea.vmem %s2, 80
  %s43 = scalar_lea.vmem %s0, 80
  %v44 = vld [vmem:[%s43] sm:$0xff]
  %45 = vst [vmem:[%s42] sm:$0xff] %v44
  %s46 = scalar_lea.vmem %s2, 88
  %s47 = scalar_lea.vmem %s0, 88
  %v48 = vld [vmem:[%s47] sm:$0xff]
  %49 = vst [vmem:[%s46] sm:$0xff] %v48
  %s50 = scalar_lea.vmem %s2, 96
  %s51 = scalar_lea.vmem %s0, 96
  %v52 = vld [vmem:[%s51] sm:$0xff]
  %53 = vst [vmem:[%s50] sm:$0xff] %v52
  %s54 = scalar_lea.vmem %s2, 104
  %s55 = scalar_lea.vmem %s0, 104
  %v56 = vld [vmem:[%s55] sm:$0xff]
  %57 = vst [vmem:[%s54] sm:$0xff] %v56
  %s58 = scalar_lea.vmem %s2, 112
  %s59 = scalar_lea.vmem %s0, 112
  %v60 = vld [vmem:[%s59] sm:$0xff]
  %61 = vst [vmem:[%s58] sm:$0xff] %v60
  %s62 = scalar_lea.vmem %s2, 120
  %s63 = scalar_lea.vmem %s0, 120
  %v64 = vld [vmem:[%s63] sm:$0xff]
  %65 = vst [vmem:[%s62] sm:$0xff] %v64
  %v66 = vld [vmem:[%s1] sm:$0xff]
  %67 = vst [vmem:[%s3] sm:$0xff] %v66
  %s68 = scalar_lea.vmem %s3, 8
  %s69 = scalar_lea.vmem %s1, 8
  %v70 = vld [vmem:[%s69] sm:$0xff]
  %71 = vst [vmem:[%s68] sm:$0xff] %v70
  %s72 = scalar_lea.vmem %s3, 16
  %s73 = scalar_lea.vmem %s1, 16
  %v74 = vld [vmem:[%s73] sm:$0xff]
  %75 = vst [vmem:[%s72] sm:$0xff] %v74
  %s76 = scalar_lea.vmem %s3, 24
  %s77 = scalar_lea.vmem %s1, 24
  %v78 = vld [vmem:[%s77] sm:$0xff]
  %79 = vst [vmem:[%s76] sm:$0xff] %v78
  %s80 = scalar_lea.vmem %s3, 32
  %s81 = scalar_lea.vmem %s1, 32
  %v82 = vld [vmem:[%s81] sm:$0xff]
  %83 = vst [vmem:[%s80] sm:$0xff] %v82
  %s84 = scalar_lea.vmem %s3, 40
  %s85 = scalar_lea.vmem %s1, 40
  %v86 = vld [vmem:[%s85] sm:$0xff]
  %87 = vst [vmem:[%s84] sm:$0xff] %v86
  %s88 = scalar_lea.vmem %s3, 48
  %s89 = scalar_lea.vmem %s1, 48
  %v90 = vld [vmem:[%s89] sm:$0xff]
  %91 = vst [vmem:[%s88] sm:$0xff] %v90
  %s92 = scalar_lea.vmem %s3, 56
  %s93 = scalar_lea.vmem %s1, 56
  %v94 = vld [vmem:[%s93] sm:$0xff]
  %95 = vst [vmem:[%s92] sm:$0xff] %v94
  %s96 = scalar_lea.vmem %s3, 64
  %s97 = scalar_lea.vmem %s1, 64
  %v98 = vld [vmem:[%s97] sm:$0xff]
  %99 = vst [vmem:[%s96] sm:$0xff] %v98
  %s100 = scalar_lea.vmem %s3, 72
  %s101 = scalar_lea.vmem %s1, 72
  %v102 = vld [vmem:[%s101] sm:$0xff]
  %103 = vst [vmem:[%s100] sm:$0xff] %v102
  %s104 = scalar_lea.vmem %s3, 80
  %s105 = scalar_lea.vmem %s1, 80
  %v106 = vld [vmem:[%s105] sm:$0xff]
  %107 = vst [vmem:[%s104] sm:$0xff] %v106
  %s108 = scalar_lea.vmem %s3, 88
  %s109 = scalar_lea.vmem %s1, 88
  %v110 = vld [vmem:[%s109] sm:$0xff]
  %111 = vst [vmem:[%s108] sm:$0xff] %v110
  %s112 = scalar_lea.vmem %s3, 96
  %s113 = scalar_lea.vmem %s1, 96
  %v114 = vld [vmem:[%s113] sm:$0xff]
  %115 = vst [vmem:[%s112] sm:$0xff] %v114
  %s116 = scalar_lea.vmem %s3, 104
  %s117 = scalar_lea.vmem %s1, 104
  %v118 = vld [vmem:[%s117] sm:$0xff]
  %119 = vst [vmem:[%s116] sm:$0xff] %v118
  %s120 = scalar_lea.vmem %s3, 112
  %s121 = scalar_lea.vmem %s1, 112
  %v122 = vld [vmem:[%s121] sm:$0xff]
  %123 = vst [vmem:[%s120] sm:$0xff] %v122
  %s124 = scalar_lea.vmem %s3, 120
  %s125 = scalar_lea.vmem %s1, 120
  %v126 = vld [vmem:[%s125] sm:$0xff]
  %127 = vst [vmem:[%s124] sm:$0xff] %v126

// kernel: complex_adaptive_avg_pool2d.1
$region0: #{complex_adaptive_avg_pool2d.1}
  #allocation0 [shape = 'u32[]', space=smem, size = 0x4, offset = 0x4, fixed_abs, tag = 'smem constant byte address 0x4 - core index']
  #allocation1 [shape = 'u32[72,128]{1,0:T(1,128)}', space=vmem, size = 0x9000, scoped, tag = 'internal scratch']
  %s0 = inlined_call_operand.vmem [shape: f32[8,512], index: 0, kind: input, shape index: {}]
  %s1 = inlined_call_operand.vmem [shape: f32[512,128], index: 1, kind: input, shape index: {}]
  %s2 = inlined_call_operand.vmem [shape: f32[8,128], index: 2, kind: output, shape index: {}]
  %s3 = sld [smem:[#allocation0]]
  $region18: #{complex_adaptive_avg_pool2d.1} parent=0
    _
  %s5 = ssub.s32 1, %s3
  %s6 = scalar_select 0, %s5, %s3
  // Predicated region
  $region2: #{complex_adaptive_avg_pool2d.1} parent=0 // pred_check
    _
  $region3: #{complex_adaptive_avg_pool2d.1} parent=0 // pred_check_branch
    %8 = sbr.rel (0) target = $region5
  $region4: #{complex_adaptive_avg_pool2d.1} parent=0 // pred_region
    _
  $region5: #{complex_adaptive_avg_pool2d.1} parent=0 // pred_fallthru
    _
  // Predicated region
  $region6: #{complex_adaptive_avg_pool2d.1} parent=0 // pred_check
    _
  $region7: #{complex_adaptive_avg_pool2d.1} parent=0 // pred_check_branch
    %10 = sbr.rel (0) target = $region9
  $region8: #{complex_adaptive_avg_pool2d.1} parent=0 // pred_region
    _
  $region9: #{complex_adaptive_avg_pool2d.1} parent=0 // pred_fallthru
    _
  %v11 = vld [vmem:[%s0] sm:$0xff]
  %v12 = vld [vmem:[%s0 + $0x8] sm:$0xff]
  %v13 = vld [vmem:[%s0 + $0x10] sm:$0xff]
  %v14 = vld [vmem:[%s0 + $0x18] sm:$0xff]
  %v15 = vld [vmem:[%s1] sm:$0xff]
  %v16 = vld [vmem:[%s1 + $0x8] sm:$0xff]
  %v17 = vld [vmem:[%s1 + $0x10] sm:$0xff]
  %v18 = vld [vmem:[%s1 + $0x18] sm:$0xff]
  %v19 = vld [vmem:[%s1 + $0x20] sm:$0xff]
  %v20 = vld [vmem:[%s1 + $0x28] sm:$0xff]
  %v21 = vld [vmem:[%s1 + $0x30] sm:$0xff]
  %v22 = vld [vmem:[%s1 + $0x38] sm:$0xff]
  %v23 = vld [vmem:[%s1 + $0x40] sm:$0xff]
  %v24 = vld [vmem:[%s1 + $0x48] sm:$0xff]
  %v25 = vld [vmem:[%s1 + $0x50] sm:$0xff]
  %v26 = vld [vmem:[%s1 + $0x58] sm:$0xff]
  %v27 = vld [vmem:[%s1 + $0x60] sm:$0xff]
  %v28 = vld [vmem:[%s1 + $0x68] sm:$0xff]
  %v29 = vld [vmem:[%s1 + $0x70] sm:$0xff]
  %v30 = vld [vmem:[%s1 + $0x78] sm:$0xff]
  %v31 = vld [vmem:[%s1 + $0x80] sm:$0xff]
  %v32 = vld [vmem:[%s1 + $0x88] sm:$0xff]
  %v33 = vld [vmem:[%s1 + $0x90] sm:$0xff]
  %v34 = vld [vmem:[%s1 + $0x98] sm:$0xff]
  %v35 = vld [vmem:[%s1 + $0xa0] sm:$0xff]
  %v36 = vld [vmem:[%s1 + $0xa8] sm:$0xff]
  %v37 = vld [vmem:[%s1 + $0xb0] sm:$0xff]
  %v38 = vld [vmem:[%s1 + $0xb8] sm:$0xff]
  %v39 = vld [vmem:[%s1 + $0xc0] sm:$0xff]
  %v40 = vld [vmem:[%s1 + $0xc8] sm:$0xff]
  %v41 = vld [vmem:[%s1 + $0xd0] sm:$0xff]
  %v42 = vld [vmem:[%s1 + $0xd8] sm:$0xff]
  %v43 = vld [vmem:[%s1 + $0xe0] sm:$0xff]
  %v44 = vld [vmem:[%s1 + $0xe8] sm:$0xff]
  %v45 = vld [vmem:[%s1 + $0xf0] sm:$0xff]
  %v46 = vld [vmem:[%s1 + $0xf8] sm:$0xff]
  %v47 = vld [vmem:[%s1 + $0x100] sm:$0xff]
  %v48 = vld [vmem:[%s1 + $0x108] sm:$0xff]
  %v49 = vld [vmem:[%s1 + $0x110] sm:$0xff]
  %v50 = vld [vmem:[%s1 + $0x118] sm:$0xff]
  %v51 = vld [vmem:[%s1 + $0x120] sm:$0xff]
  %v52 = vld [vmem:[%s1 + $0x128] sm:$0xff]
  %v53 = vld [vmem:[%s1 + $0x130] sm:$0xff]
  %v54 = vld [vmem:[%s1 + $0x138] sm:$0xff]
  %v55 = vld [vmem:[%s1 + $0x140] sm:$0xff]
  %v56 = vld [vmem:[%s1 + $0x148] sm:$0xff]
  %v57 = vld [vmem:[%s1 + $0x150] sm:$0xff]
  %v58 = vld [vmem:[%s1 + $0x158] sm:$0xff]
  %v59 = vld [vmem:[%s1 + $0x160] sm:$0xff]
  %v60 = vld [vmem:[%s1 + $0x168] sm:$0xff]
  %v61 = vld [vmem:[%s1 + $0x170] sm:$0xff]
  %v62 = vld [vmem:[%s1 + $0x178] sm:$0xff]
  %v63 = vld [vmem:[%s1 + $0x180] sm:$0xff]
  %v64 = vld [vmem:[%s1 + $0x188] sm:$0xff]
  %v65 = vld [vmem:[%s1 + $0x190] sm:$0xff]
  %v66 = vld [vmem:[%s1 + $0x198] sm:$0xff]
  %v67 = vld [vmem:[%s1 + $0x1a0] sm:$0xff]
  %v68 = vld [vmem:[%s1 + $0x1a8] sm:$0xff]
  %v69 = vld [vmem:[%s1 + $0x1b0] sm:$0xff]
  %v70 = vld [vmem:[%s1 + $0x1b8] sm:$0xff]
  %v71 = vld [vmem:[%s1 + $0x1c0] sm:$0xff]
  %v72 = vld [vmem:[%s1 + $0x1c8] sm:$0xff]
  %v73 = vld [vmem:[%s1 + $0x1d0] sm:$0xff]
  %v74 = vld [vmem:[%s1 + $0x1d8] sm:$0xff]
  %v75 = vld [vmem:[%s1 + $0x1e0] sm:$0xff]
  %v76 = vld [vmem:[%s1 + $0x1e8] sm:$0xff]
  %v77 = vld [vmem:[%s1 + $0x1f0] sm:$0xff]
  %v78 = vld [vmem:[%s1 + $0x1f8] sm:$0xff]
  %79 = vmatpush.msra.mxu0 %v30
  %80 = vmatpush.msra.mxu0 %v29
  %81 = vmatpush.msra.mxu0 %v28
  %82 = vmatpush.msra.mxu0 %v27
  %83 = vmatpush.msra.mxu0 %v26
  %84 = vmatpush.msra.mxu0 %v25
  %85 = vmatpush.msra.mxu0 %v24
  %86 = vmatpush.msra.mxu0 %v23
  %87 = vmatpush.msra.mxu0 %v22
  %88 = vmatpush.msra.mxu0 %v21
  %89 = vmatpush.msra.mxu0 %v20
  %90 = vmatpush.msra.mxu0 %v19
  %91 = vmatpush.msra.mxu0 %v18
  %92 = vmatpush.msra.mxu0 %v17
  %93 = vmatpush.msra.mxu0 %v16
  %94 = vmatpush.msra.mxu0 %v15
  %95 = vmatmul.f32.gmra.mxu0 %v11
  %v96 = vpop.f32.mrf.mxu0
  %v97 = vadd.f32 0.0, %v96
  %98 = vdwg.mxu0
  %99 = vmatpush.msra.mxu0 %v46
  %100 = vmatpush.msra.mxu0 %v45
  %101 = vmatpush.msra.mxu0 %v44
  %102 = vmatpush.msra.mxu0 %v43
  %103 = vmatpush.msra.mxu0 %v42
  %104 = vmatpush.msra.mxu0 %v41
  %105 = vmatpush.msra.mxu0 %v40
  %106 = vmatpush.msra.mxu0 %v39
  %107 = vmatpush.msra.mxu0 %v38
  %108 = vmatpush.msra.mxu0 %v37
  %109 = vmatpush.msra.mxu0 %v36
  %110 = vmatpush.msra.mxu0 %v35
  %111 = vmatpush.msra.mxu0 %v34
  %112 = vmatpush.msra.mxu0 %v33
  %113 = vmatpush.msra.mxu0 %v32
  %114 = vmatpush.msra.mxu0 %v31
  %115 = vmatmul.f32.gmra.mxu0 %v12
  %v116 = vpop.f32.mrf.mxu0
  %v117 = vadd.f32 %v97, %v116
  %118 = vdwg.mxu0
  %119 = vmatpush.msra.mxu0 %v62
  %120 = vmatpush.msra.mxu0 %v61
  %121 = vmatpush.msra.mxu0 %v60
  %122 = vmatpush.msra.mxu0 %v59
  %123 = vmatpush.msra.mxu0 %v58
  %124 = vmatpush.msra.mxu0 %v57
  %125 = vmatpush.msra.mxu0 %v56
  %126 = vmatpush.msra.mxu0 %v55
  %127 = vmatpush.msra.mxu0 %v54
  %128 = vmatpush.msra.mxu0 %v53
  %129 = vmatpush.msra.mxu0 %v52
  %130 = vmatpush.msra.mxu0 %v51
  %131 = vmatpush.msra.mxu0 %v50
  %132 = vmatpush.msra.mxu0 %v49
  %133 = vmatpush.msra.mxu0 %v48
  %134 = vmatpush.msra.mxu0 %v47
  %135 = vmatmul.f32.gmra.mxu0 %v13
  %v136 = vpop.f32.mrf.mxu0
  %v137 = vadd.f32 %v117, %v136
  %138 = vdwg.mxu0
  %139 = vmatpush.msra.mxu0 %v78
  %140 = vmatpush.msra.mxu0 %v77
  %141 = vmatpush.msra.mxu0 %v76
  %142 = vmatpush.msra.mxu0 %v75
  %143 = vmatpush.msra.mxu0 %v74
  %144 = vmatpush.msra.mxu0 %v73
  %145 = vmatpush.msra.mxu0 %v72
  %146 = vmatpush.msra.mxu0 %v71
  %147 = vmatpush.msra.mxu0 %v70
  %148 = vmatpush.msra.mxu0 %v69
  %149 = vmatpush.msra.mxu0 %v68
  %150 = vmatpush.msra.mxu0 %v67
  %151 = vmatpush.msra.mxu0 %v66
  %152 = vmatpush.msra.mxu0 %v65
  %153 = vmatpush.msra.mxu0 %v64
  %154 = vmatpush.msra.mxu0 %v63
  %155 = vmatmul.f32.gmra.mxu0 %v14
  %v156 = vpop.f32.mrf.mxu0
  %v157 = vadd.f32 %v137, %v156
  %158 = vdwg.mxu0
  %159 = vst [vmem:[%s2] sm:$0xff] %v157
  // Predicated region
  $region10: #{complex_adaptive_avg_pool2d.1} parent=0 // pred_check
    _
  $region11: #{complex_adaptive_avg_pool2d.1} parent=0 // pred_check_branch
    %161 = sbr.rel (0) target = $region13
  $region12: #{complex_adaptive_avg_pool2d.1} parent=0 // pred_region
    _
  $region13: #{complex_adaptive_avg_pool2d.1} parent=0 // pred_fallthru
    _
  // Predicated region
  $region14: #{complex_adaptive_avg_pool2d.1} parent=0 // pred_check
    _
  $region15: #{complex_adaptive_avg_pool2d.1} parent=0 // pred_check_branch
    %163 = sbr.rel (0) target = $region17
  $region16: #{complex_adaptive_avg_pool2d.1} parent=0 // pred_region
    _
  $region17: #{complex_adaptive_avg_pool2d.1} parent=0 // pred_fallthru
    _

</llo_original>
